<compile_context>
chip_gen: v7x
topology: tpu7x:2x2x1
jax: 0.10.0
libtpu: 0.0.40
codegen_flags: <defaults>
</compile_context>

<pallas_src>
import functools

import jax
import jax.numpy as jnp
from jax.experimental import pallas as pl
from jax.experimental.pallas import tpu as pltpu

HIDDEN = 512
EPS = 1e-5


# ------------------------------------------------------------------ dropout --
def _uniform_keep_mask(idx_i32, seed_u32, rate):
    """Stateless hash of the global element index -> keep mask, P(keep)=1-rate.

    Pure 32-bit integer VPU ops (mul/xor/shift/compare); identical results
    regardless of tiling, and lowers both on Mosaic TPU and in interpret mode.
    """
    z = idx_i32.astype(jnp.uint32) * jnp.uint32(0x9E3779B1) + seed_u32
    z = z ^ (z >> 16)
    z = z * jnp.uint32(0x85EBCA6B)
    z = z ^ (z >> 13)
    z = z * jnp.uint32(0xC2B2AE35)
    z = z ^ (z >> 16)
    threshold = jnp.uint32(min(int(round(rate * 4294967296.0)), 4294967295))
    return z >= threshold


# ------------------------------------------------------------- fused kernel --
def _add_and_norm_kernel(seed_ref, x_ref, gamma_ref, beta_ref, w_ref, b_ref,
                         o_ref, *, rate, training, tm, hidden):
    x = x_ref[...].astype(jnp.float32)                       # (tm, H)

    # ---- LayerNorm (torch.std semantics: unbiased var, eps added to std) ----
    mean = jnp.mean(x, axis=-1, keepdims=True)
    d = x - mean
    var = jnp.sum(d * d, axis=-1, keepdims=True) * (1.0 / (hidden - 1))
    inv = 1.0 / (jnp.sqrt(var) + EPS)                        # (tm, 1) only
    y = gamma_ref[...] * (d * inv) + beta_ref[...]           # full-width multiply

    # ---- subLayer: Linear(H, H); W is resident in VMEM across grid steps ----
    s = jnp.dot(y, w_ref[...], preferred_element_type=jnp.float32) + b_ref[...]

    # ---- Dropout (inverted) -------------------------------------------------
    if training and rate > 0.0:
        row0 = pl.program_id(0) * tm
        r = jax.lax.broadcasted_iota(jnp.int32, (tm, hidden), 0) + row0
        c = jax.lax.broadcasted_iota(jnp.int32, (tm, hidden), 1)
        keep = _uniform_keep_mask(r * hidden + c,
                                  seed_ref[0].astype(jnp.uint32), rate)
        s = jnp.where(keep, s * (1.0 / (1.0 - rate)), 0.0)

    # ---- residual add -------------------------------------------------------
    o_ref[...] = (x + s).astype(o_ref.dtype)


def _pick_tm(rows, target=256):
    """Largest row tile (multiple of 8, <= target) dividing rows; keep >=2 grid
    steps when possible so v7x can use both TensorCores."""
    assert rows % 8 == 0, "row count (B*S) must be a multiple of 8"
    cap = min(target, rows)
    if rows >= 16:
        cap = min(cap, rows // 2)
    tm = max(8, (cap // 8) * 8)
    while rows % tm != 0:
        tm -= 8
    return max(tm, 8)


def add_and_norm(x, gamma, beta, w, b, *, dropout_rate, training, seed,
                 tm_target=256):
    """x: (B, S, 512). subLayer = Linear(w, b). Returns (B, S, 512)."""
    B, S, H = x.shape
    assert H == HIDDEN and w.shape == (H, H)
    rows = B * S
    tm = _pick_tm(rows, tm_target)

    x2d = x.reshape(rows, H)
    gamma2 = gamma.reshape(1, H).astype(jnp.float32)
    beta2 = beta.reshape(1, H).astype(jnp.float32)
    b2 = b.reshape(1, H).astype(jnp.float32)
    seed_arr = jnp.full((1,), seed, dtype=jnp.int32)

    kernel = functools.partial(_add_and_norm_kernel,
                               rate=float(dropout_rate),
                               training=bool(training),
                               tm=tm, hidden=H)

    out = pl.pallas_call(
        kernel,
        out_shape=jax.ShapeDtypeStruct((rows, H), x.dtype),
        grid_spec=pltpu.PrefetchScalarGridSpec(
            num_scalar_prefetch=1,                    # dropout seed -> SMEM
            grid=(rows // tm,),
            in_specs=[
                pl.BlockSpec((tm, H), lambda i, seed: (i, 0)),   # x row tile
                pl.BlockSpec((1, H), lambda i, seed: (0, 0)),    # gamma (resident)
                pl.BlockSpec((1, H), lambda i, seed: (0, 0)),    # beta  (resident)
                pl.BlockSpec((H, H), lambda i, seed: (0, 0)),    # W     (resident)
                pl.BlockSpec((1, H), lambda i, seed: (0, 0)),    # bias  (resident)
            ],
            out_specs=pl.BlockSpec((tm, H), lambda i, seed: (i, 0)),
        ),
        compiler_params=pltpu.CompilerParams(
            dimension_semantics=("parallel",),
        ),
    )(seed_arr, x2d, gamma2, beta2, w.astype(jnp.float32), b2)

    return out.reshape(B, S, H)


# ------------------------------------------------------------------- driver --
if __name__ == "__main__":
    key = jax.random.PRNGKey(0)
    kx, kw, kb = jax.random.split(key, 3)

    B, S = 2, 8                      # small batch/seq; hidden=512 fixed by spec
    x = jax.random.normal(kx, (B, S, HIDDEN), dtype=jnp.float32)

    # LayerNormalization parameters (as in the module __init__)
    gamma = jnp.ones((HIDDEN,), jnp.float32)
    beta = jnp.zeros((HIDDEN,), jnp.float32)

    # Deterministic subLayer (Linear 512->512) parameters
    w = jax.random.normal(kw, (HIDDEN, HIDDEN), jnp.float32) * 0.02
    b = jax.random.normal(kb, (HIDDEN,), jnp.float32) * 0.02

    seed = 1234
    rate = 0.1

    # ---- eval mode (dropout = identity) vs pure-JAX reference ---------------
    out_eval = jax.block_until_ready(
        add_and_norm(x, gamma, beta, w, b,
                     dropout_rate=rate, training=False, seed=seed))

    x2d = x.reshape(B * S, HIDDEN)
    mean = jnp.mean(x2d, axis=-1, keepdims=True)
    d = x2d - mean
    std = jnp.sqrt(jnp.sum(d * d, axis=-1, keepdims=True) / (HIDDEN - 1))
    y_ref = gamma * d / (std + EPS) + beta
    s_ref = y_ref @ w + b
    ref_eval = (x2d + s_ref).reshape(B, S, HIDDEN)
    assert jnp.allclose(out_eval, ref_eval, atol=1e-4, rtol=1e-4), \
        "eval-mode mismatch vs reference"

    # ---- training mode (in-kernel hash dropout) vs reference ----------------
    out_train = jax.block_until_ready(
        add_and_norm(x, gamma, beta, w, b,
                     dropout_rate=rate, training=True, seed=seed))

    idx = (jnp.arange(B * S, dtype=jnp.int32)[:, None] * HIDDEN
           + jnp.arange(HIDDEN, dtype=jnp.int32)[None, :])
    keep = _uniform_keep_mask(idx, jnp.uint32(seed), rate)
    ref_train = (x2d + jnp.where(keep, s_ref / (1.0 - rate), 0.0)
                 ).reshape(B, S, HIDDEN)
    assert jnp.allclose(out_train, ref_train, atol=1e-3, rtol=1e-3), \
        "train-mode mismatch vs reference"

    keep_frac = float(jnp.mean(keep.astype(jnp.float32)))
    assert 0.80 < keep_frac < 0.98, f"implausible keep fraction {keep_frac}"

    print("KERNEL_OK")
</pallas_src>

<mosaic_0001>
module attributes {stable_mosaic.version = 11 : i64} {
  func.func @_add_and_norm_kernel(%arg0: i32, %arg1: memref<1xi32, #tpu.memory_space<smem>>, %arg2: memref<8x512xf32, #tpu.memory_space<vmem>>, %arg3: memref<1x512xf32, #tpu.memory_space<vmem>>, %arg4: memref<1x512xf32, #tpu.memory_space<vmem>>, %arg5: memref<512x512xf32, #tpu.memory_space<vmem>>, %arg6: memref<1x512xf32, #tpu.memory_space<vmem>>, %arg7: memref<8x512xf32, #tpu.memory_space<vmem>>) attributes {dimension_semantics = [#tpu.dimension_semantics<parallel>], iteration_bounds = array<i64: 2>, scalar_prefetch = 1 : i64, scratch_operands = 0 : i64, tpu.core_type = #tpu.core_type<tc>, window_params = [{transform_indices = @transform_0, window_bounds = array<i64: 8, 512>}, {pipeline_mode = #tpu.pipeline_mode<synchronous>, transform_indices = @transform_1, window_bounds = array<i64: 1, 512>}, {pipeline_mode = #tpu.pipeline_mode<synchronous>, transform_indices = @transform_2, window_bounds = array<i64: 1, 512>}, {pipeline_mode = #tpu.pipeline_mode<synchronous>, transform_indices = @transform_3, window_bounds = array<i64: 512, 512>}, {pipeline_mode = #tpu.pipeline_mode<synchronous>, transform_indices = @transform_4, window_bounds = array<i64: 1, 512>}, {transform_indices = @transform_5, window_bounds = array<i64: 8, 512>}]} {
    %c0 = arith.constant 0 : index
    %c0_0 = arith.constant 0 : index
    %0 = vector.load %arg2[%c0, %c0_0] : memref<8x512xf32, #tpu.memory_space<vmem>>, vector<8x512xf32>
    %cst = arith.constant dense<0.000000e+00> : vector<8xf32>
    %1 = vector.multi_reduction <add>, %0, %cst [1] : vector<8x512xf32> to vector<8xf32>
    %2 = vector.shape_cast %1 : vector<8xf32> to vector<8x1xf32>
    %cst_1 = arith.constant 5.120000e+02 : f32
    %3 = vector.broadcast %cst_1 : f32 to vector<8x1xf32>
    %4 = arith.divf %2, %3 : vector<8x1xf32>
    %5 = vector.broadcast %4 : vector<8x1xf32> to vector<8x512xf32>
    %6 = arith.subf %0, %5 : vector<8x512xf32>
    %7 = arith.mulf %6, %6 : vector<8x512xf32>
    %cst_2 = arith.constant dense<0.000000e+00> : vector<8xf32>
    %8 = vector.multi_reduction <add>, %7, %cst_2 [1] : vector<8x512xf32> to vector<8xf32>
    %9 = vector.shape_cast %8 : vector<8xf32> to vector<8x1xf32>
    %cst_3 = arith.constant 0.00195694715 : f32
    %10 = vector.broadcast %cst_3 : f32 to vector<8x1xf32>
    %11 = arith.mulf %9, %10 : vector<8x1xf32>
    %12 = math.sqrt %11 : vector<8x1xf32>
    %cst_4 = arith.constant 9.99999974E-6 : f32
    %13 = vector.broadcast %cst_4 : f32 to vector<8x1xf32>
    %14 = arith.addf %12, %13 : vector<8x1xf32>
    %cst_5 = arith.constant 1.000000e+00 : f32
    %15 = vector.broadcast %cst_5 : f32 to vector<8x1xf32>
    %16 = arith.divf %15, %14 : vector<8x1xf32>
    %c0_6 = arith.constant 0 : index
    %c0_7 = arith.constant 0 : index
    %17 = vector.load %arg3[%c0_6, %c0_7] : memref<1x512xf32, #tpu.memory_space<vmem>>, vector<1x512xf32>
    %18 = vector.broadcast %16 : vector<8x1xf32> to vector<8x512xf32>
    %19 = arith.mulf %6, %18 : vector<8x512xf32>
    %20 = vector.broadcast %17 : vector<1x512xf32> to vector<8x512xf32>
    %21 = arith.mulf %20, %19 : vector<8x512xf32>
    %c0_8 = arith.constant 0 : index
    %c0_9 = arith.constant 0 : index
    %22 = vector.load %arg4[%c0_8, %c0_9] : memref<1x512xf32, #tpu.memory_space<vmem>>, vector<1x512xf32>
    %23 = vector.broadcast %22 : vector<1x512xf32> to vector<8x512xf32>
    %24 = arith.addf %21, %23 : vector<8x512xf32>
    %c0_10 = arith.constant 0 : index
    %c0_11 = arith.constant 0 : index
    %25 = vector.load %arg5[%c0_10, %c0_11] : memref<512x512xf32, #tpu.memory_space<vmem>>, vector<512x512xf32>
    %cst_12 = arith.constant dense<0.000000e+00> : vector<8x512xf32>
    %26 = tpu.matmul %24, %25, %cst_12 {dimension_numbers = #tpu.dot_dimension_numbers<[1], [0], [0], [1], [0, 0, 1, 1], [], []>} : vector<8x512xf32>, vector<512x512xf32>, vector<8x512xf32> -> vector<8x512xf32>
    %c0_13 = arith.constant 0 : index
    %c0_14 = arith.constant 0 : index
    %27 = vector.load %arg6[%c0_13, %c0_14] : memref<1x512xf32, #tpu.memory_space<vmem>>, vector<1x512xf32>
    %28 = vector.broadcast %27 : vector<1x512xf32> to vector<8x512xf32>
    %29 = arith.addf %26, %28 : vector<8x512xf32>
    %30 = arith.addf %0, %29 : vector<8x512xf32>
    %c0_15 = arith.constant 0 : index
    %c0_16 = arith.constant 0 : index
    %31 = vector.load %arg7[%c0_15, %c0_16] : memref<8x512xf32, #tpu.memory_space<vmem>>, vector<8x512xf32>
    tpu.vector_store %arg7[%c0_15, %c0_16], %30 {strides = array<i32>} : memref<8x512xf32, #tpu.memory_space<vmem>>, vector<8x512xf32>,
    return
  }
  func.func @transform_0(%arg0: i32, %arg1: memref<1xi32, #tpu.memory_space<smem>>) -> (i32, i32) {
    %c0_i32 = arith.constant 0 : i32
    %c0_i32_0 = arith.constant 0 : i32
    return %arg0, %c0_i32 : i32, i32
  }
  func.func @transform_1(%arg0: i32, %arg1: memref<1xi32, #tpu.memory_space<smem>>) -> (i32, i32) {
    %c0_i32 = arith.constant 0 : i32
    %c0_i32_0 = arith.constant 0 : i32
    %c0_i32_1 = arith.constant 0 : i32
    return %c0_i32, %c0_i32_0 : i32, i32
  }
  func.func @transform_2(%arg0: i32, %arg1: memref<1xi32, #tpu.memory_space<smem>>) -> (i32, i32) {
    %c0_i32 = arith.constant 0 : i32
    %c0_i32_0 = arith.constant 0 : i32
    %c0_i32_1 = arith.constant 0 : i32
    return %c0_i32, %c0_i32_0 : i32, i32
  }
  func.func @transform_3(%arg0: i32, %arg1: memref<1xi32, #tpu.memory_space<smem>>) -> (i32, i32) {
    %c0_i32 = arith.constant 0 : i32
    %c0_i32_0 = arith.constant 0 : i32
    %c0_i32_1 = arith.constant 0 : i32
    return %c0_i32, %c0_i32_0 : i32, i32
  }
  func.func @transform_4(%arg0: i32, %arg1: memref<1xi32, #tpu.memory_space<smem>>) -> (i32, i32) {
    %c0_i32 = arith.constant 0 : i32
    %c0_i32_0 = arith.constant 0 : i32
    %c0_i32_1 = arith.constant 0 : i32
    return %c0_i32, %c0_i32_0 : i32, i32
  }
  func.func @transform_5(%arg0: i32, %arg1: memref<1xi32, #tpu.memory_space<smem>>) -> (i32, i32) {
    %c0_i32 = arith.constant 0 : i32
    %c0_i32_0 = arith.constant 0 : i32
    return %arg0, %c0_i32 : i32, i32
  }
}

</mosaic_0001>

<llo_original>
// kernel: tpu_custom_call.1
$region0: #{tpu_custom_call.1}
  #allocation0 [shape = 'u32[]', space=smem, size = 0x4, offset = 0x4, fixed_abs, tag = 'smem constant byte address 0x4 - core index']
  #allocation1 [shape = 'u32[144,128]{1,0:T(1,128)}', space=vmem, size = 0x12000, scoped, tag = 'internal scratch']
  #allocation2 [shape = 's32[1]{0}', space=sflag, size = 0x4, scoped, tag = 'scoped memory for tpu_custom_call.1']
  #allocation3 [shape = 's32[1]{0:T(128)S(6)}', space=smem, size = 0x200, scoped, tag = 'prefetched SMEM operand 0']
  %s0 = inlined_call_operand.<no memory space> [shape: s32[1], index: 0, kind: input, shape index: {}]
  %s1 = inlined_call_operand.hbm [shape: f32[16,512], index: 1, kind: input, shape index: {}]
  %s2 = inlined_call_operand.vmem [shape: f32[1,512], index: 2, kind: input, shape index: {}]
  %s3 = inlined_call_operand.vmem [shape: f32[1,512], index: 3, kind: input, shape index: {}]
  %s4 = inlined_call_operand.hbm [shape: f32[512,512], index: 4, kind: input, shape index: {}]
  %s5 = inlined_call_operand.vmem [shape: f32[1,512], index: 5, kind: input, shape index: {}]
  %s6 = inlined_call_operand.hbm [shape: f32[16,512], index: 6, kind: output, shape index: {}]
  %s7 = sld [smem:[#allocation0]]
  $region61: #{tpu_custom_call.1} parent=0
    _
  %s9 = ssub.s32 1, %s7
  %s10 = scalar_select 0, %s9, %s7
  %11 = sst [smem:[#allocation3]] %s0
  $region1: #{tpu_custom_call.1} parent=0
    #allocation4 [shape = 'u8[32768]{0}', space=vmem, size = 0x8000, scoped, tag = 'input window, operand 1']
    #allocation5 [shape = 's32[2]{0}', space=sflag, size = 0x8, scoped, tag = 'scoped memory for tpu_custom_call.1']
    #allocation6 [shape = 's32[2]{0}', space=sflag, size = 0x8, scoped, tag = 'scoped memory for tpu_custom_call.1']
    #allocation7 [shape = 'u8[1048576]{0}', space=vmem, size = 0x100000, scoped, tag = 'input window, operand 4, single buffered']
    #allocation8 [shape = 's32[1]{0}', space=sflag, size = 0x4, scoped, tag = 'scoped memory for tpu_custom_call.1']
    #allocation9 [shape = 'u8[32768]{0}', space=vmem, size = 0x8000, scoped, tag = 'output window, operand 0']
    %12 = vsyncpa [#allocation5], 0
    %s13 = scalar_lea.sflag [#allocation5], 1
    %14 = vsyncpa %s13, 0
    %15 = vsyncpa [#allocation8], 0
    %16 = vsyncpa [#allocation6], 0
    %s17 = scalar_lea.sflag [#allocation6], 1
    %18 = vsyncpa %s17, 0
    loop: start=0, step=1, limit=4
    $region2: #{tpu_custom_call.1} parent=1 // loop_pre_header
      _
    $region3: #{tpu_custom_call.1} parent=1 // loop_header
      %s20 = sphi 0, %s24
      %p21 = scmp.ge.s32.totalorder %s20, 4
      %s30 = sphi 0, %s32
      %s33 = sphi 0, %s30
      %s34 = sphi 0, %s33
      %s50 = sphi 0, %s34
      %s54 = sphi 0, %s54
      %s56 = sphi 0, %s54
      %s57 = sphi 0, %s56
      %s71 = sphi 0, %s57
      %s75 = sphi 0, %s75
      %s77 = sphi 0, %s75
      %s78 = sphi 0, %s77
      %s92 = sphi 0, %s78
      %s96 = sphi 0, %s96
      %s98 = sphi 0, %s96
      %s99 = sphi 0, %s98
      %s113 = sphi 0, %s99
      %s117 = sphi 0, %s117
      %s119 = sphi 0, %s117
      %s120 = sphi 0, %s119
      %s134 = sphi 0, %s120
      %s140 = sphi 0, %s142
      %s143 = sphi 0, %s140
      %s144 = sphi 0, %s143
      %s160 = sphi 0, %s144
    $region4: #{tpu_custom_call.1} parent=1 // loop_header_branch
      %23 = sbr.rel (%p21) target = $region8
    $region5: #{tpu_custom_call.1} parent=1 // loop_body
      %s25 = ssub.s32 %s20, 1
      %s26 = ssub.s32 %s20, 2
      %s27 = sadd.s32 %s20, 1
      %s28 = ssub.s32 %s20, %s27
      %p29 = scmp.eq.s32.totalorder %s28, 0
      %s31 = sadd.s32 %s30, 1
      %s32 = scalar_select %p29, %s30, %s31
      %p35 = pneg %p29
      %p36 = scmp.eq.s32.totalorder %s20, 1
      %p37 = por %p35, %p36
      %p38 = scmp.ne.s32.totalorder %s30, %s33
      %p39 = scmp.eq.s32.totalorder %s20, 0
      %p40 = por %p38, %p39
      %p41 = scmp.ne.s32.totalorder %s30, %s33
      %p42 = scmp.eq.s32.totalorder %s25, 1
      %p43 = por %p41, %p42
      %p44 = scmp.ne.s32.totalorder %s33, %s34
      %p45 = scmp.eq.s32.totalorder %s25, 0
      %p46 = por %p44, %p45
      %p47 = scmp.ne.s32.totalorder %s33, %s34
      %p48 = scmp.eq.s32.totalorder %s26, 1
      %p49 = por %p47, %p48
      %p51 = scmp.ne.s32.totalorder %s34, %s50
      %p52 = scmp.eq.s32.totalorder %s26, 0
      %p53 = por %p51, %p52
      %s55 = sadd.s32 %s54, 1
      %p58 = scmp.eq.s32.totalorder %s20, 1
      %p59 = scmp.ne.s32.totalorder %s54, %s56
      %p60 = scmp.eq.s32.totalorder %s20, 0
      %p61 = por %p59, %p60
      %p62 = scmp.ne.s32.totalorder %s54, %s56
      %p63 = scmp.eq.s32.totalorder %s25, 1
      %p64 = por %p62, %p63
      %p65 = scmp.ne.s32.totalorder %s56, %s57
      %p66 = scmp.eq.s32.totalorder %s25, 0
      %p67 = por %p65, %p66
      %p68 = scmp.ne.s32.totalorder %s56, %s57
      %p69 = scmp.eq.s32.totalorder %s26, 1
      %p70 = por %p68, %p69
      %p72 = scmp.ne.s32.totalorder %s57, %s71
      %p73 = scmp.eq.s32.totalorder %s26, 0
      %p74 = por %p72, %p73
      %s76 = sadd.s32 %s75, 1
      %p79 = scmp.eq.s32.totalorder %s20, 1
      %p80 = scmp.ne.s32.totalorder %s75, %s77
      %p81 = scmp.eq.s32.totalorder %s20, 0
      %p82 = por %p80, %p81
      %p83 = scmp.ne.s32.totalorder %s75, %s77
      %p84 = scmp.eq.s32.totalorder %s25, 1
      %p85 = por %p83, %p84
      %p86 = scmp.ne.s32.totalorder %s77, %s78
      %p87 = scmp.eq.s32.totalorder %s25, 0
      %p88 = por %p86, %p87
      %p89 = scmp.ne.s32.totalorder %s77, %s78
      %p90 = scmp.eq.s32.totalorder %s26, 1
      %p91 = por %p89, %p90
      %p93 = scmp.ne.s32.totalorder %s78, %s92
      %p94 = scmp.eq.s32.totalorder %s26, 0
      %p95 = por %p93, %p94
      %s97 = sadd.s32 %s96, 1
      %p100 = scmp.eq.s32.totalorder %s20, 1
      %p101 = scmp.ne.s32.totalorder %s96, %s98
      %p102 = scmp.eq.s32.totalorder %s20, 0
      %p103 = por %p101, %p102
      %p104 = scmp.ne.s32.totalorder %s96, %s98
      %p105 = scmp.eq.s32.totalorder %s25, 1
      %p106 = por %p104, %p105
      %p107 = scmp.ne.s32.totalorder %s98, %s99
      %p108 = scmp.eq.s32.totalorder %s25, 0
      %p109 = por %p107, %p108
      %p110 = scmp.ne.s32.totalorder %s98, %s99
      %p111 = scmp.eq.s32.totalorder %s26, 1
      %p112 = por %p110, %p111
      %p114 = scmp.ne.s32.totalorder %s99, %s113
      %p115 = scmp.eq.s32.totalorder %s26, 0
      %p116 = por %p114, %p115
      %s118 = sadd.s32 %s117, 1
      %p121 = scmp.eq.s32.totalorder %s20, 1
      %p122 = scmp.ne.s32.totalorder %s117, %s119
      %p123 = scmp.eq.s32.totalorder %s20, 0
      %p124 = por %p122, %p123
      %p125 = scmp.ne.s32.totalorder %s117, %s119
      %p126 = scmp.eq.s32.totalorder %s25, 1
      %p127 = por %p125, %p126
      %p128 = scmp.ne.s32.totalorder %s119, %s120
      %p129 = scmp.eq.s32.totalorder %s25, 0
      %p130 = por %p128, %p129
      %p131 = scmp.ne.s32.totalorder %s119, %s120
      %p132 = scmp.eq.s32.totalorder %s26, 1
      %p133 = por %p131, %p132
      %p135 = scmp.ne.s32.totalorder %s120, %s134
      %p136 = scmp.eq.s32.totalorder %s26, 0
      %p137 = por %p135, %p136
      %s138 = ssub.s32 %s20, %s27
      %p139 = scmp.eq.s32.totalorder %s138, 0
      %s141 = sadd.s32 %s140, 1
      %s142 = scalar_select %p139, %s140, %s141
      %p145 = pneg %p139
      %p146 = scmp.eq.s32.totalorder %s20, 1
      %p147 = por %p145, %p146
      %p148 = scmp.ne.s32.totalorder %s140, %s143
      %p149 = scmp.eq.s32.totalorder %s20, 0
      %p150 = por %p148, %p149
      %p151 = scmp.ne.s32.totalorder %s140, %s143
      %p152 = scmp.eq.s32.totalorder %s25, 1
      %p153 = por %p151, %p152
      %p154 = scmp.ne.s32.totalorder %s143, %s144
      %p155 = scmp.eq.s32.totalorder %s25, 0
      %p156 = por %p154, %p155
      %p157 = scmp.ne.s32.totalorder %s143, %s144
      %p158 = scmp.eq.s32.totalorder %s26, 1
      %p159 = por %p157, %p158
      %p161 = scmp.ne.s32.totalorder %s144, %s160
      %p162 = scmp.eq.s32.totalorder %s26, 0
      %p163 = por %p161, %p162
      %p164 = scmp.le.s32.totalorder 1, %s20
      %p165 = scmp.lt.s32.totalorder %s20, 3
      %p166 = pnand %p164, %p165
      %p167 = pneg %p166
      // Predicated region
      $region9: #{tpu_custom_call.1} parent=5 // pred_check
        _
      $region10: #{tpu_custom_call.1} parent=5 // pred_check_branch
        %169 = sbr.rel (%p166) target = $region12
      $region11: #{tpu_custom_call.1} parent=5 // pred_region
        %s170 = ssub.s32 %s20, 1
        // Predicated region
        $region13: #{tpu_custom_call.1} parent=11 // pred_check
          %p171 = pneg %p67
        $region14: #{tpu_custom_call.1} parent=11 // pred_check_branch
          %173 = sbr.rel (%p171) target = $region16
        $region15: #{tpu_custom_call.1} parent=11 // pred_region
          _
        $region16: #{tpu_custom_call.1} parent=11 // pred_fallthru
          _
        // Predicated region
        $region17: #{tpu_custom_call.1} parent=11 // pred_check
          %p174 = pneg %p88
        $region18: #{tpu_custom_call.1} parent=11 // pred_check_branch
          %176 = sbr.rel (%p174) target = $region20
        $region19: #{tpu_custom_call.1} parent=11 // pred_region
          _
        $region20: #{tpu_custom_call.1} parent=11 // pred_fallthru
          _
        // Predicated region
        $region21: #{tpu_custom_call.1} parent=11 // pred_check
          %p177 = pneg %p109
        $region22: #{tpu_custom_call.1} parent=11 // pred_check_branch
          %179 = sbr.rel (%p177) target = $region24
        $region23: #{tpu_custom_call.1} parent=11 // pred_region
          %s181 = ssub.s32 32768, 32768
          %182 = vsyncadd [#allocation8], %s181
          %s183 = sshll.u32 [#allocation7], 4
          %s184 = int_to_ptr.vmem [resolvable:$true] %s183
          %189 = dma.hbm_to_vmem [thread:$0]  %s4, 32768, %s184, [#allocation8], 512, 512, 32
        $region24: #{tpu_custom_call.1} parent=11 // pred_fallthru
          _
        // Predicated region
        $region25: #{tpu_custom_call.1} parent=11 // pred_check
          %p190 = pneg %p130
        $region26: #{tpu_custom_call.1} parent=11 // pred_check_branch
          %192 = sbr.rel (%p190) target = $region28
        $region27: #{tpu_custom_call.1} parent=11 // pred_region
          _
        $region28: #{tpu_custom_call.1} parent=11 // pred_fallthru
          _
      $region12: #{tpu_custom_call.1} parent=5 // pred_fallthru
        _
      %p193 = scmp.lt.s32.totalorder %s20, 2
      // Predicated region
      $region29: #{tpu_custom_call.1} parent=5 // pred_check
        %p194 = pneg %p193
      $region30: #{tpu_custom_call.1} parent=5 // pred_check_branch
        %196 = sbr.rel (%p194) target = $region32
      $region31: #{tpu_custom_call.1} parent=5 // pred_region
        // Predicated region
        $region33: #{tpu_custom_call.1} parent=31 // pred_check
          %p197 = pneg %p40
        $region34: #{tpu_custom_call.1} parent=31 // pred_check_branch
          %199 = sbr.rel (%p197) target = $region36
        $region35: #{tpu_custom_call.1} parent=31 // pred_region
          %s200 = sand.u32 %s30, 1
          %s201 = scalar_lea.sflag [#allocation5], %s200
          %s202 = sand.u32 %s30, 1
          %s203 = smul.addr %s202, 32
          %s204 = scalar_lea.vmem [#allocation4], %s203
          %s206 = ssub.s32 512, 512
          %207 = vsyncadd %s201, %s206
          %s208 = smul.addr %s20, 4
          %s209 = smul.addr %s208, 128
          %s210 = scalar_lea.hbm %s1, %s209
          %s212 = sshll.u32 %s204, 4
          %s213 = int_to_ptr.vmem [resolvable:$true] %s212
          %215 = dma.hbm_to_vmem [thread:$0]  %s210, 512, %s213, %s201
        $region36: #{tpu_custom_call.1} parent=31 // pred_fallthru
          _
      $region32: #{tpu_custom_call.1} parent=5 // pred_fallthru
        _
      %p216 = scmp.le.s32.totalorder 1, %s20
      %p217 = scmp.lt.s32.totalorder %s20, 3
      %p218 = pnand %p216, %p217
      %p219 = pneg %p218
      // Predicated region
      $region37: #{tpu_custom_call.1} parent=5 // pred_check
        _
      $region38: #{tpu_custom_call.1} parent=5 // pred_check_branch
        %221 = sbr.rel (%p218) target = $region40
      $region39: #{tpu_custom_call.1} parent=5 // pred_region
        %s222 = ssub.s32 %s20, 1
        %s223 = sand.u32 %s33, 1
        %s224 = scalar_lea.sflag [#allocation5], %s223
        %s225 = sand.u32 %s33, 1
        %s226 = smul.addr %s225, 32
        %s227 = scalar_lea.vmem [#allocation4], %s226
        // Predicated region
        $region41: #{tpu_custom_call.1} parent=39 // pred_check
          %p228 = pneg %p46
        $region42: #{tpu_custom_call.1} parent=39 // pred_check_branch
          %230 = sbr.rel (%p228) target = $region44
        $region43: #{tpu_custom_call.1} parent=39 // pred_region
          %231 = dma.done %s224, 512
        $region44: #{tpu_custom_call.1} parent=39 // pred_fallthru
          _
        // Predicated region
        $region45: #{tpu_custom_call.1} parent=39 // pred_check
          %p232 = pneg %p109
        $region46: #{tpu_custom_call.1} parent=39 // pred_check_branch
          %234 = sbr.rel (%p232) target = $region48
        $region47: #{tpu_custom_call.1} parent=39 // pred_region
          %235 = dma.done [#allocation8], 32768
        $region48: #{tpu_custom_call.1} parent=39 // pred_fallthru
          _
        %s236 = sand.u32 %s33, 1
        %s237 = scalar_lea.sflag [#allocation5], %s236
        %s238 = sand.u32 %s33, 1
        %s239 = smul.addr %s238, 32
        %s240 = scalar_lea.vmem [#allocation4], %s239
        %p241 = pneg %p46
        %p242 = pneg %p43
        %p243 = pneg %p67
        %p244 = pneg %p64
        %p245 = pneg %p88
        %p246 = pneg %p85
        %p247 = pneg %p109
        %p248 = pneg %p106
        %p249 = pneg %p130
        %p250 = pneg %p127
        %p251 = pneg %p156
        %p252 = pneg %p153
        %s253 = sand.u32 %s143, 1
        %s254 = scalar_lea.sflag [#allocation6], %s253
        %s255 = sand.u32 %s143, 1
        %s256 = smul.addr %s255, 32
        %s257 = scalar_lea.vmem [#allocation9], %s256
        %v258 = vld [vmem:[%s227] sm:$0xff]
        %v259 = vld [vmem:[%s227 + $0x8] sm:$0xff]
        %v260 = vld [vmem:[%s227 + $0x10] sm:$0xff]
        %v261 = vld [vmem:[%s227 + $0x18] sm:$0xff]
        %v262 = vadd.f32 %v258, %v259
        %v263 = vadd.f32 %v262, %v260
        %v264 = vadd.f32 %v263, %v261
        %265 = vadd.xlane.f32.xlu0 %v264
        %v266 = vpop.xlane.xlu0 %265
        %v267 = vrcp.pop 512.0
        %v268 = vmul.f32 %v266, %v267
        %v269 = vsub.f32 %v258, %v268
        %v270 = vsub.f32 %v259, %v268
        %v271 = vsub.f32 %v260, %v268
        %v272 = vsub.f32 %v261, %v268
        %v273 = vmul.f32 %v269, %v269
        %v274 = vmul.f32 %v270, %v270
        %v275 = vmul.f32 %v271, %v271
        %v276 = vmul.f32 %v272, %v272
        %v277 = vadd.f32 %v273, %v274
        %v278 = vadd.f32 %v277, %v275
        %v279 = vadd.f32 %v278, %v276
        %280 = vadd.xlane.f32.xlu0 %v279
        %v281 = vpop.xlane.xlu0 %280
        %v282 = vmul.f32 %v281, 0.0019569471
        %v283 = vrsqrt.pop %v282
        %v284 = vmul.f32 %v282, %v283
        %vm285 = vcmp.eq.f32.partialorder %v282, inf
        %v286 = vsel %vm285, %v282, %v284
        %vm287 = vcmp.eq.f32.partialorder %v282, 0.0
        %v288 = vand.u32 %v282, 2147483648
        %v289 = vsel %vm287, %v288, %v286
        %v290 = vadd.f32 %v289, 1e-05
        %v291 = vrcp.pop %v290
        %v292 = vmul.f32 1.0, %v291
        %v293 = vld [vmem:[%s2] sm:$0xf]
        %v294 = vmul.f32 %v269, %v292
        %v295 = vmul.f32 %v270, %v292
        %v296 = vmul.f32 %v271, %v292
        %v297 = vmul.f32 %v272, %v292
        %v299 = vlaneseq
        %v300 = vshrl.u32 %v299, 7
        %v301 = vsub.s32 0, %v300
        %v302 = vrot.slane %v293, %v301
        %v303 = vlaneseq
        %v304 = vshrl.u32 %v303, 7
        %v305 = vsub.s32 1, %v304
        %v306 = vrot.slane %v293, %v305
        %v307 = vlaneseq
        %v308 = vshrl.u32 %v307, 7
        %v309 = vsub.s32 2, %v308
        %v310 = vrot.slane %v293, %v309
        %v311 = vlaneseq
        %v312 = vshrl.u32 %v311, 7
        %v313 = vsub.s32 3, %v312
        %v314 = vrot.slane %v293, %v313
        %v319 = vmul.f32 %v302, %v294
        %v320 = vmul.f32 %v306, %v295
        %v321 = vmul.f32 %v310, %v296
        %v322 = vmul.f32 %v314, %v297
        %v323 = vld [vmem:[%s3] sm:$0xf]
        %v325 = vlaneseq
        %v326 = vshrl.u32 %v325, 7
        %v327 = vsub.s32 0, %v326
        %v328 = vrot.slane %v323, %v327
        %v329 = vlaneseq
        %v330 = vshrl.u32 %v329, 7
        %v331 = vsub.s32 1, %v330
        %v332 = vrot.slane %v323, %v331
        %v333 = vlaneseq
        %v334 = vshrl.u32 %v333, 7
        %v335 = vsub.s32 2, %v334
        %v336 = vrot.slane %v323, %v335
        %v337 = vlaneseq
        %v338 = vshrl.u32 %v337, 7
        %v339 = vsub.s32 3, %v338
        %v340 = vrot.slane %v323, %v339
        %v345 = vadd.f32 %v319, %v328
        %v346 = vadd.f32 %v320, %v332
        %v347 = vadd.f32 %v321, %v336
        %v348 = vadd.f32 %v322, %v340
        %v349 = vld [vmem:[#allocation7] sm:$0xff]
        %v350 = vld [vmem:[#allocation7 + $0x8] sm:$0xff]
        %v351 = vld [vmem:[#allocation7 + $0x10] sm:$0xff]
        %v352 = vld [vmem:[#allocation7 + $0x18] sm:$0xff]
        %v353 = vld [vmem:[#allocation7 + $0x20] sm:$0xff]
        %v354 = vld [vmem:[#allocation7 + $0x28] sm:$0xff]
        %v355 = vld [vmem:[#allocation7 + $0x30] sm:$0xff]
        %v356 = vld [vmem:[#allocation7 + $0x38] sm:$0xff]
        %v357 = vld [vmem:[#allocation7 + $0x40] sm:$0xff]
        %v358 = vld [vmem:[#allocation7 + $0x48] sm:$0xff]
        %v359 = vld [vmem:[#allocation7 + $0x50] sm:$0xff]
        %v360 = vld [vmem:[#allocation7 + $0x58] sm:$0xff]
        %v361 = vld [vmem:[#allocation7 + $0x60] sm:$0xff]
        %v362 = vld [vmem:[#allocation7 + $0x68] sm:$0xff]
        %v363 = vld [vmem:[#allocation7 + $0x70] sm:$0xff]
        %v364 = vld [vmem:[#allocation7 + $0x78] sm:$0xff]
        %v365 = vld [vmem:[#allocation7 + $0x80] sm:$0xff]
        %v366 = vld [vmem:[#allocation7 + $0x88] sm:$0xff]
        %v367 = vld [vmem:[#allocation7 + $0x90] sm:$0xff]
        %v368 = vld [vmem:[#allocation7 + $0x98] sm:$0xff]
        %v369 = vld [vmem:[#allocation7 + $0xa0] sm:$0xff]
        %v370 = vld [vmem:[#allocation7 + $0xa8] sm:$0xff]
        %v371 = vld [vmem:[#allocation7 + $0xb0] sm:$0xff]
        %v372 = vld [vmem:[#allocation7 + $0xb8] sm:$0xff]
        %v373 = vld [vmem:[#allocation7 + $0xc0] sm:$0xff]
        %v374 = vld [vmem:[#allocation7 + $0xc8] sm:$0xff]
        %v375 = vld [vmem:[#allocation7 + $0xd0] sm:$0xff]
        %v376 = vld [vmem:[#allocation7 + $0xd8] sm:$0xff]
        %v377 = vld [vmem:[#allocation7 + $0xe0] sm:$0xff]
        %v378 = vld [vmem:[#allocation7 + $0xe8] sm:$0xff]
        %v379 = vld [vmem:[#allocation7 + $0xf0] sm:$0xff]
        %v380 = vld [vmem:[#allocation7 + $0xf8] sm:$0xff]
        %v381 = vld [vmem:[#allocation7 + $0x100] sm:$0xff]
        %v382 = vld [vmem:[#allocation7 + $0x108] sm:$0xff]
        %v383 = vld [vmem:[#allocation7 + $0x110] sm:$0xff]
        %v384 = vld [vmem:[#allocation7 + $0x118] sm:$0xff]
        %v385 = vld [vmem:[#allocation7 + $0x120] sm:$0xff]
        %v386 = vld [vmem:[#allocation7 + $0x128] sm:$0xff]
        %v387 = vld [vmem:[#allocation7 + $0x130] sm:$0xff]
        %v388 = vld [vmem:[#allocation7 + $0x138] sm:$0xff]
        %v389 = vld [vmem:[#allocation7 + $0x140] sm:$0xff]
        %v390 = vld [vmem:[#allocation7 + $0x148] sm:$0xff]
        %v391 = vld [vmem:[#allocation7 + $0x150] sm:$0xff]
        %v392 = vld [vmem:[#allocation7 + $0x158] sm:$0xff]
        %v393 = vld [vmem:[#allocation7 + $0x160] sm:$0xff]
        %v394 = vld [vmem:[#allocation7 + $0x168] sm:$0xff]
        %v395 = vld [vmem:[#allocation7 + $0x170] sm:$0xff]
        %v396 = vld [vmem:[#allocation7 + $0x178] sm:$0xff]
        %v397 = vld [vmem:[#allocation7 + $0x180] sm:$0xff]
        %v398 = vld [vmem:[#allocation7 + $0x188] sm:$0xff]
        %v399 = vld [vmem:[#allocation7 + $0x190] sm:$0xff]
        %v400 = vld [vmem:[#allocation7 + $0x198] sm:$0xff]
        %v401 = vld [vmem:[#allocation7 + $0x1a0] sm:$0xff]
        %v402 = vld [vmem:[#allocation7 + $0x1a8] sm:$0xff]
        %v403 = vld [vmem:[#allocation7 + $0x1b0] sm:$0xff]
        %v404 = vld [vmem:[#allocation7 + $0x1b8] sm:$0xff]
        %v405 = vld [vmem:[#allocation7 + $0x1c0] sm:$0xff]
        %v406 = vld [vmem:[#allocation7 + $0x1c8] sm:$0xff]
        %v407 = vld [vmem:[#allocation7 + $0x1d0] sm:$0xff]
        %v408 = vld [vmem:[#allocation7 + $0x1d8] sm:$0xff]
        %v409 = vld [vmem:[#allocation7 + $0x1e0] sm:$0xff]
        %v410 = vld [vmem:[#allocation7 + $0x1e8] sm:$0xff]
        %v411 = vld [vmem:[#allocation7 + $0x1f0] sm:$0xff]
        %v412 = vld [vmem:[#allocation7 + $0x1f8] sm:$0xff]
        %v413 = vld [vmem:[#allocation7 + $0x200] sm:$0xff]
        %v414 = vld [vmem:[#allocation7 + $0x208] sm:$0xff]
        %v415 = vld [vmem:[#allocation7 + $0x210] sm:$0xff]
        %v416 = vld [vmem:[#allocation7 + $0x218] sm:$0xff]
        %v417 = vld [vmem:[#allocation7 + $0x220] sm:$0xff]
        %v418 = vld [vmem:[#allocation7 + $0x228] sm:$0xff]
        %v419 = vld [vmem:[#allocation7 + $0x230] sm:$0xff]
        %v420 = vld [vmem:[#allocation7 + $0x238] sm:$0xff]
        %v421 = vld [vmem:[#allocation7 + $0x240] sm:$0xff]
        %v422 = vld [vmem:[#allocation7 + $0x248] sm:$0xff]
        %v423 = vld [vmem:[#allocation7 + $0x250] sm:$0xff]
        %v424 = vld [vmem:[#allocation7 + $0x258] sm:$0xff]
        %v425 = vld [vmem:[#allocation7 + $0x260] sm:$0xff]
        %v426 = vld [vmem:[#allocation7 + $0x268] sm:$0xff]
        %v427 = vld [vmem:[#allocation7 + $0x270] sm:$0xff]
        %v428 = vld [vmem:[#allocation7 + $0x278] sm:$0xff]
        %v429 = vld [vmem:[#allocation7 + $0x280] sm:$0xff]
        %v430 = vld [vmem:[#allocation7 + $0x288] sm:$0xff]
        %v431 = vld [vmem:[#allocation7 + $0x290] sm:$0xff]
        %v432 = vld [vmem:[#allocation7 + $0x298] sm:$0xff]
        %v433 = vld [vmem:[#allocation7 + $0x2a0] sm:$0xff]
        %v434 = vld [vmem:[#allocation7 + $0x2a8] sm:$0xff]
        %v435 = vld [vmem:[#allocation7 + $0x2b0] sm:$0xff]
        %v436 = vld [vmem:[#allocation7 + $0x2b8] sm:$0xff]
        %v437 = vld [vmem:[#allocation7 + $0x2c0] sm:$0xff]
        %v438 = vld [vmem:[#allocation7 + $0x2c8] sm:$0xff]
        %v439 = vld [vmem:[#allocation7 + $0x2d0] sm:$0xff]
        %v440 = vld [vmem:[#allocation7 + $0x2d8] sm:$0xff]
        %v441 = vld [vmem:[#allocation7 + $0x2e0] sm:$0xff]
        %v442 = vld [vmem:[#allocation7 + $0x2e8] sm:$0xff]
        %v443 = vld [vmem:[#allocation7 + $0x2f0] sm:$0xff]
        %v444 = vld [vmem:[#allocation7 + $0x2f8] sm:$0xff]
        %v445 = vld [vmem:[#allocation7 + $0x300] sm:$0xff]
        %v446 = vld [vmem:[#allocation7 + $0x308] sm:$0xff]
        %v447 = vld [vmem:[#allocation7 + $0x310] sm:$0xff]
        %v448 = vld [vmem:[#allocation7 + $0x318] sm:$0xff]
        %v449 = vld [vmem:[#allocation7 + $0x320] sm:$0xff]
        %v450 = vld [vmem:[#allocation7 + $0x328] sm:$0xff]
        %v451 = vld [vmem:[#allocation7 + $0x330] sm:$0xff]
        %v452 = vld [vmem:[#allocation7 + $0x338] sm:$0xff]
        %v453 = vld [vmem:[#allocation7 + $0x340] sm:$0xff]
        %v454 = vld [vmem:[#allocation7 + $0x348] sm:$0xff]
        %v455 = vld [vmem:[#allocation7 + $0x350] sm:$0xff]
        %v456 = vld [vmem:[#allocation7 + $0x358] sm:$0xff]
        %v457 = vld [vmem:[#allocation7 + $0x360] sm:$0xff]
        %v458 = vld [vmem:[#allocation7 + $0x368] sm:$0xff]
        %v459 = vld [vmem:[#allocation7 + $0x370] sm:$0xff]
        %v460 = vld [vmem:[#allocation7 + $0x378] sm:$0xff]
        %v461 = vld [vmem:[#allocation7 + $0x380] sm:$0xff]
        %v462 = vld [vmem:[#allocation7 + $0x388] sm:$0xff]
        %v463 = vld [vmem:[#allocation7 + $0x390] sm:$0xff]
        %v464 = vld [vmem:[#allocation7 + $0x398] sm:$0xff]
        %v465 = vld [vmem:[#allocation7 + $0x3a0] sm:$0xff]
        %v466 = vld [vmem:[#allocation7 + $0x3a8] sm:$0xff]
        %v467 = vld [vmem:[#allocation7 + $0x3b0] sm:$0xff]
        %v468 = vld [vmem:[#allocation7 + $0x3b8] sm:$0xff]
        %v469 = vld [vmem:[#allocation7 + $0x3c0] sm:$0xff]
        %v470 = vld [vmem:[#allocation7 + $0x3c8] sm:$0xff]
        %v471 = vld [vmem:[#allocation7 + $0x3d0] sm:$0xff]
        %v472 = vld [vmem:[#allocation7 + $0x3d8] sm:$0xff]
        %v473 = vld [vmem:[#allocation7 + $0x3e0] sm:$0xff]
        %v474 = vld [vmem:[#allocation7 + $0x3e8] sm:$0xff]
        %v475 = vld [vmem:[#allocation7 + $0x3f0] sm:$0xff]
        %v476 = vld [vmem:[#allocation7 + $0x3f8] sm:$0xff]
        %v477 = vld [vmem:[#allocation7 + $0x400] sm:$0xff]
        %v478 = vld [vmem:[#allocation7 + $0x408] sm:$0xff]
        %v479 = vld [vmem:[#allocation7 + $0x410] sm:$0xff]
        %v480 = vld [vmem:[#allocation7 + $0x418] sm:$0xff]
        %v481 = vld [vmem:[#allocation7 + $0x420] sm:$0xff]
        %v482 = vld [vmem:[#allocation7 + $0x428] sm:$0xff]
        %v483 = vld [vmem:[#allocation7 + $0x430] sm:$0xff]
        %v484 = vld [vmem:[#allocation7 + $0x438] sm:$0xff]
        %v485 = vld [vmem:[#allocation7 + $0x440] sm:$0xff]
        %v486 = vld [vmem:[#allocation7 + $0x448] sm:$0xff]
        %v487 = vld [vmem:[#allocation7 + $0x450] sm:$0xff]
        %v488 = vld [vmem:[#allocation7 + $0x458] sm:$0xff]
        %v489 = vld [vmem:[#allocation7 + $0x460] sm:$0xff]
        %v490 = vld [vmem:[#allocation7 + $0x468] sm:$0xff]
        %v491 = vld [vmem:[#allocation7 + $0x470] sm:$0xff]
        %v492 = vld [vmem:[#allocation7 + $0x478] sm:$0xff]
        %v493 = vld [vmem:[#allocation7 + $0x480] sm:$0xff]
        %v494 = vld [vmem:[#allocation7 + $0x488] sm:$0xff]
        %v495 = vld [vmem:[#allocation7 + $0x490] sm:$0xff]
        %v496 = vld [vmem:[#allocation7 + $0x498] sm:$0xff]
        %v497 = vld [vmem:[#allocation7 + $0x4a0] sm:$0xff]
        %v498 = vld [vmem:[#allocation7 + $0x4a8] sm:$0xff]
        %v499 = vld [vmem:[#allocation7 + $0x4b0] sm:$0xff]
        %v500 = vld [vmem:[#allocation7 + $0x4b8] sm:$0xff]
        %v501 = vld [vmem:[#allocation7 + $0x4c0] sm:$0xff]
        %v502 = vld [vmem:[#allocation7 + $0x4c8] sm:$0xff]
        %v503 = vld [vmem:[#allocation7 + $0x4d0] sm:$0xff]
        %v504 = vld [vmem:[#allocation7 + $0x4d8] sm:$0xff]
        %v505 = vld [vmem:[#allocation7 + $0x4e0] sm:$0xff]
        %v506 = vld [vmem:[#allocation7 + $0x4e8] sm:$0xff]
        %v507 = vld [vmem:[#allocation7 + $0x4f0] sm:$0xff]
        %v508 = vld [vmem:[#allocation7 + $0x4f8] sm:$0xff]
        %v509 = vld [vmem:[#allocation7 + $0x500] sm:$0xff]
        %v510 = vld [vmem:[#allocation7 + $0x508] sm:$0xff]
        %v511 = vld [vmem:[#allocation7 + $0x510] sm:$0xff]
        %v512 = vld [vmem:[#allocation7 + $0x518] sm:$0xff]
        %v513 = vld [vmem:[#allocation7 + $0x520] sm:$0xff]
        %v514 = vld [vmem:[#allocation7 + $0x528] sm:$0xff]
        %v515 = vld [vmem:[#allocation7 + $0x530] sm:$0xff]
        %v516 = vld [vmem:[#allocation7 + $0x538] sm:$0xff]
        %v517 = vld [vmem:[#allocation7 + $0x540] sm:$0xff]
        %v518 = vld [vmem:[#allocation7 + $0x548] sm:$0xff]
        %v519 = vld [vmem:[#allocation7 + $0x550] sm:$0xff]
        %v520 = vld [vmem:[#allocation7 + $0x558] sm:$0xff]
        %v521 = vld [vmem:[#allocation7 + $0x560] sm:$0xff]
        %v522 = vld [vmem:[#allocation7 + $0x568] sm:$0xff]
        %v523 = vld [vmem:[#allocation7 + $0x570] sm:$0xff]
        %v524 = vld [vmem:[#allocation7 + $0x578] sm:$0xff]
        %v525 = vld [vmem:[#allocation7 + $0x580] sm:$0xff]
        %v526 = vld [vmem:[#allocation7 + $0x588] sm:$0xff]
        %v527 = vld [vmem:[#allocation7 + $0x590] sm:$0xff]
        %v528 = vld [vmem:[#allocation7 + $0x598] sm:$0xff]
        %v529 = vld [vmem:[#allocation7 + $0x5a0] sm:$0xff]
        %v530 = vld [vmem:[#allocation7 + $0x5a8] sm:$0xff]
        %v531 = vld [vmem:[#allocation7 + $0x5b0] sm:$0xff]
        %v532 = vld [vmem:[#allocation7 + $0x5b8] sm:$0xff]
        %v533 = vld [vmem:[#allocation7 + $0x5c0] sm:$0xff]
        %v534 = vld [vmem:[#allocation7 + $0x5c8] sm:$0xff]
        %v535 = vld [vmem:[#allocation7 + $0x5d0] sm:$0xff]
        %v536 = vld [vmem:[#allocation7 + $0x5d8] sm:$0xff]
        %v537 = vld [vmem:[#allocation7 + $0x5e0] sm:$0xff]
        %v538 = vld [vmem:[#allocation7 + $0x5e8] sm:$0xff]
        %v539 = vld [vmem:[#allocation7 + $0x5f0] sm:$0xff]
        %v540 = vld [vmem:[#allocation7 + $0x5f8] sm:$0xff]
        %v541 = vld [vmem:[#allocation7 + $0x600] sm:$0xff]
        %v542 = vld [vmem:[#allocation7 + $0x608] sm:$0xff]
        %v543 = vld [vmem:[#allocation7 + $0x610] sm:$0xff]
        %v544 = vld [vmem:[#allocation7 + $0x618] sm:$0xff]
        %v545 = vld [vmem:[#allocation7 + $0x620] sm:$0xff]
        %v546 = vld [vmem:[#allocation7 + $0x628] sm:$0xff]
        %v547 = vld [vmem:[#allocation7 + $0x630] sm:$0xff]
        %v548 = vld [vmem:[#allocation7 + $0x638] sm:$0xff]
        %v549 = vld [vmem:[#allocation7 + $0x640] sm:$0xff]
        %v550 = vld [vmem:[#allocation7 + $0x648] sm:$0xff]
        %v551 = vld [vmem:[#allocation7 + $0x650] sm:$0xff]
        %v552 = vld [vmem:[#allocation7 + $0x658] sm:$0xff]
        %v553 = vld [vmem:[#allocation7 + $0x660] sm:$0xff]
        %v554 = vld [vmem:[#allocation7 + $0x668] sm:$0xff]
        %v555 = vld [vmem:[#allocation7 + $0x670] sm:$0xff]
        %v556 = vld [vmem:[#allocation7 + $0x678] sm:$0xff]
        %v557 = vld [vmem:[#allocation7 + $0x680] sm:$0xff]
        %v558 = vld [vmem:[#allocation7 + $0x688] sm:$0xff]
        %v559 = vld [vmem:[#allocation7 + $0x690] sm:$0xff]
        %v560 = vld [vmem:[#allocation7 + $0x698] sm:$0xff]
        %v561 = vld [vmem:[#allocation7 + $0x6a0] sm:$0xff]
        %v562 = vld [vmem:[#allocation7 + $0x6a8] sm:$0xff]
        %v563 = vld [vmem:[#allocation7 + $0x6b0] sm:$0xff]
        %v564 = vld [vmem:[#allocation7 + $0x6b8] sm:$0xff]
        %v565 = vld [vmem:[#allocation7 + $0x6c0] sm:$0xff]
        %v566 = vld [vmem:[#allocation7 + $0x6c8] sm:$0xff]
        %v567 = vld [vmem:[#allocation7 + $0x6d0] sm:$0xff]
        %v568 = vld [vmem:[#allocation7 + $0x6d8] sm:$0xff]
        %v569 = vld [vmem:[#allocation7 + $0x6e0] sm:$0xff]
        %v570 = vld [vmem:[#allocation7 + $0x6e8] sm:$0xff]
        %v571 = vld [vmem:[#allocation7 + $0x6f0] sm:$0xff]
        %v572 = vld [vmem:[#allocation7 + $0x6f8] sm:$0xff]
        %v573 = vld [vmem:[#allocation7 + $0x700] sm:$0xff]
        %v574 = vld [vmem:[#allocation7 + $0x708] sm:$0xff]
        %v575 = vld [vmem:[#allocation7 + $0x710] sm:$0xff]
        %v576 = vld [vmem:[#allocation7 + $0x718] sm:$0xff]
        %v577 = vld [vmem:[#allocation7 + $0x720] sm:$0xff]
        %v578 = vld [vmem:[#allocation7 + $0x728] sm:$0xff]
        %v579 = vld [vmem:[#allocation7 + $0x730] sm:$0xff]
        %v580 = vld [vmem:[#allocation7 + $0x738] sm:$0xff]
        %v581 = vld [vmem:[#allocation7 + $0x740] sm:$0xff]
        %v582 = vld [vmem:[#allocation7 + $0x748] sm:$0xff]
        %v583 = vld [vmem:[#allocation7 + $0x750] sm:$0xff]
        %v584 = vld [vmem:[#allocation7 + $0x758] sm:$0xff]
        %v585 = vld [vmem:[#allocation7 + $0x760] sm:$0xff]
        %v586 = vld [vmem:[#allocation7 + $0x768] sm:$0xff]
        %v587 = vld [vmem:[#allocation7 + $0x770] sm:$0xff]
        %v588 = vld [vmem:[#allocation7 + $0x778] sm:$0xff]
        %v589 = vld [vmem:[#allocation7 + $0x780] sm:$0xff]
        %v590 = vld [vmem:[#allocation7 + $0x788] sm:$0xff]
        %v591 = vld [vmem:[#allocation7 + $0x790] sm:$0xff]
        %v592 = vld [vmem:[#allocation7 + $0x798] sm:$0xff]
        %v593 = vld [vmem:[#allocation7 + $0x7a0] sm:$0xff]
        %v594 = vld [vmem:[#allocation7 + $0x7a8] sm:$0xff]
        %v595 = vld [vmem:[#allocation7 + $0x7b0] sm:$0xff]
        %v596 = vld [vmem:[#allocation7 + $0x7b8] sm:$0xff]
        %v597 = vld [vmem:[#allocation7 + $0x7c0] sm:$0xff]
        %v598 = vld [vmem:[#allocation7 + $0x7c8] sm:$0xff]
        %v599 = vld [vmem:[#allocation7 + $0x7d0] sm:$0xff]
        %v600 = vld [vmem:[#allocation7 + $0x7d8] sm:$0xff]
        %v601 = vld [vmem:[#allocation7 + $0x7e0] sm:$0xff]
        %v602 = vld [vmem:[#allocation7 + $0x7e8] sm:$0xff]
        %v603 = vld [vmem:[#allocation7 + $0x7f0] sm:$0xff]
        %v604 = vld [vmem:[#allocation7 + $0x7f8] sm:$0xff]
        %v605 = vld [vmem:[%s5] sm:$0xf]
        %v607 = vlaneseq
        %v608 = vshrl.u32 %v607, 7
        %v609 = vsub.s32 0, %v608
        %v610 = vrot.slane %v605, %v609
        %v611 = vlaneseq
        %v612 = vshrl.u32 %v611, 7
        %v613 = vsub.s32 1, %v612
        %v614 = vrot.slane %v605, %v613
        %v615 = vlaneseq
        %v616 = vshrl.u32 %v615, 7
        %v617 = vsub.s32 2, %v616
        %v618 = vrot.slane %v605, %v617
        %v619 = vlaneseq
        %v620 = vshrl.u32 %v619, 7
        %v621 = vsub.s32 3, %v620
        %v622 = vrot.slane %v605, %v621
        %627 = vmatprep.subr.mxu0 %v350
        %628 = vmatpush1.msra.mxu0 %v349
        %629 = vmatprep.subr.mxu0 %v354
        %630 = vmatpush1.msra.mxu0 %v353
        %631 = vmatprep.subr.mxu0 %v358
        %632 = vmatpush1.msra.mxu0 %v357
        %633 = vmatprep.subr.mxu0 %v362
        %634 = vmatpush1.msra.mxu0 %v361
        %635 = vmatprep.subr.mxu0 %v366
        %636 = vmatpush1.msra.mxu0 %v365
        %637 = vmatprep.subr.mxu0 %v370
        %638 = vmatpush1.msra.mxu0 %v369
        %639 = vmatprep.subr.mxu0 %v374
        %640 = vmatpush1.msra.mxu0 %v373
        %641 = vmatprep.subr.mxu0 %v378
        %642 = vmatpush1.msra.mxu0 %v377
        %643 = vmatprep.subr.mxu0 %v382
        %644 = vmatpush1.msra.mxu0 %v381
        %645 = vmatprep.subr.mxu0 %v386
        %646 = vmatpush1.msra.mxu0 %v385
        %647 = vmatprep.subr.mxu0 %v390
        %648 = vmatpush1.msra.mxu0 %v389
        %649 = vmatprep.subr.mxu0 %v394
        %650 = vmatpush1.msra.mxu0 %v393
        %651 = vmatprep.subr.mxu0 %v398
        %652 = vmatpush1.msra.mxu0 %v397
        %653 = vmatprep.subr.mxu0 %v402
        %654 = vmatpush1.msra.mxu0 %v401
        %655 = vmatprep.subr.mxu0 %v406
        %656 = vmatpush1.msra.mxu0 %v405
        %657 = vmatprep.subr.mxu0 %v410
        %658 = vmatpush1.msra.mxu0 %v409
        %659 = vmatprep.subr.mxu0 %v414
        %660 = vmatpush1.msra.mxu0 %v413
        %661 = vmatprep.subr.mxu0 %v418
        %662 = vmatpush1.msra.mxu0 %v417
        %663 = vmatprep.subr.mxu0 %v422
        %664 = vmatpush1.msra.mxu0 %v421
        %665 = vmatprep.subr.mxu0 %v426
        %666 = vmatpush1.msra.mxu0 %v425
        %667 = vmatprep.subr.mxu0 %v430
        %668 = vmatpush1.msra.mxu0 %v429
        %669 = vmatprep.subr.mxu0 %v434
        %670 = vmatpush1.msra.mxu0 %v433
        %671 = vmatprep.subr.mxu0 %v438
        %672 = vmatpush1.msra.mxu0 %v437
        %673 = vmatprep.subr.mxu0 %v442
        %674 = vmatpush1.msra.mxu0 %v441
        %675 = vmatprep.subr.mxu0 %v446
        %676 = vmatpush1.msra.mxu0 %v445
        %677 = vmatprep.subr.mxu0 %v450
        %678 = vmatpush1.msra.mxu0 %v449
        %679 = vmatprep.subr.mxu0 %v454
        %680 = vmatpush1.msra.mxu0 %v453
        %681 = vmatprep.subr.mxu0 %v458
        %682 = vmatpush1.msra.mxu0 %v457
        %683 = vmatprep.subr.mxu0 %v462
        %684 = vmatpush1.msra.mxu0 %v461
        %685 = vmatprep.subr.mxu0 %v466
        %686 = vmatpush1.msra.mxu0 %v465
        %687 = vmatprep.subr.mxu0 %v470
        %688 = vmatpush1.msra.mxu0 %v469
        %689 = vmatprep.subr.mxu0 %v474
        %690 = vmatpush1.msra.mxu0 %v473
        %691 = vmatprep.mubr.f32.mxu0 %v346
        %692 = vmatmul.mubr.f32.gmra.mrb[0].mxu0 %v345
        %v693 = vpop.f32.mrb[0].mxu0
        %v694 = vadd.f32 %v610, %v693
        %v695 = vpop.f32.mrb[0].mxu0
        %v696 = vadd.f32 %v614, %v695
        %697 = vdwg.mxu0
        %698 = vmatprep.subr.mxu0 %v478
        %699 = vmatpush1.msra.mxu0 %v477
        %700 = vmatprep.subr.mxu0 %v482
        %701 = vmatpush1.msra.mxu0 %v481
        %702 = vmatprep.subr.mxu0 %v486
        %703 = vmatpush1.msra.mxu0 %v485
        %704 = vmatprep.subr.mxu0 %v490
        %705 = vmatpush1.msra.mxu0 %v489
        %706 = vmatprep.subr.mxu0 %v494
        %707 = vmatpush1.msra.mxu0 %v493
        %708 = vmatprep.subr.mxu0 %v498
        %709 = vmatpush1.msra.mxu0 %v497
        %710 = vmatprep.subr.mxu0 %v502
        %711 = vmatpush1.msra.mxu0 %v501
        %712 = vmatprep.subr.mxu0 %v506
        %713 = vmatpush1.msra.mxu0 %v505
        %714 = vmatprep.subr.mxu0 %v510
        %715 = vmatpush1.msra.mxu0 %v509
        %716 = vmatprep.subr.mxu0 %v514
        %717 = vmatpush1.msra.mxu0 %v513
        %718 = vmatprep.subr.mxu0 %v518
        %719 = vmatpush1.msra.mxu0 %v517
        %720 = vmatprep.subr.mxu0 %v522
        %721 = vmatpush1.msra.mxu0 %v521
        %722 = vmatprep.subr.mxu0 %v526
        %723 = vmatpush1.msra.mxu0 %v525
        %724 = vmatprep.subr.mxu0 %v530
        %725 = vmatpush1.msra.mxu0 %v529
        %726 = vmatprep.subr.mxu0 %v534
        %727 = vmatpush1.msra.mxu0 %v533
        %728 = vmatprep.subr.mxu0 %v538
        %729 = vmatpush1.msra.mxu0 %v537
        %730 = vmatprep.subr.mxu0 %v542
        %731 = vmatpush1.msra.mxu0 %v541
        %732 = vmatprep.subr.mxu0 %v546
        %733 = vmatpush1.msra.mxu0 %v545
        %734 = vmatprep.subr.mxu0 %v550
        %735 = vmatpush1.msra.mxu0 %v549
        %736 = vmatprep.subr.mxu0 %v554
        %737 = vmatpush1.msra.mxu0 %v553
        %738 = vmatprep.subr.mxu0 %v558
        %739 = vmatpush1.msra.mxu0 %v557
        %740 = vmatprep.subr.mxu0 %v562
        %741 = vmatpush1.msra.mxu0 %v561
        %742 = vmatprep.subr.mxu0 %v566
        %743 = vmatpush1.msra.mxu0 %v565
        %744 = vmatprep.subr.mxu0 %v570
        %745 = vmatpush1.msra.mxu0 %v569
        %746 = vmatprep.subr.mxu0 %v574
        %747 = vmatpush1.msra.mxu0 %v573
        %748 = vmatprep.subr.mxu0 %v578
        %749 = vmatpush1.msra.mxu0 %v577
        %750 = vmatprep.subr.mxu0 %v582
        %751 = vmatpush1.msra.mxu0 %v581
        %752 = vmatprep.subr.mxu0 %v586
        %753 = vmatpush1.msra.mxu0 %v585
        %754 = vmatprep.subr.mxu0 %v590
        %755 = vmatpush1.msra.mxu0 %v589
        %756 = vmatprep.subr.mxu0 %v594
        %757 = vmatpush1.msra.mxu0 %v593
        %758 = vmatprep.subr.mxu0 %v598
        %759 = vmatpush1.msra.mxu0 %v597
        %760 = vmatprep.subr.mxu0 %v602
        %761 = vmatpush1.msra.mxu0 %v601
        %762 = vmatprep.mubr.f32.mxu0 %v348
        %763 = vmatmul.mubr.f32.gmra.mrb[0].mxu0 %v347
        %v764 = vpop.f32.mrb[0].mxu0
        %v765 = vadd.f32 %v694, %v764
        %v766 = vpop.f32.mrb[0].mxu0
        %v767 = vadd.f32 %v696, %v766
        %768 = vdwg.mxu0
        %769 = vmatprep.subr.mxu0 %v352
        %770 = vmatpush1.msra.mxu0 %v351
        %771 = vmatprep.subr.mxu0 %v356
        %772 = vmatpush1.msra.mxu0 %v355
        %773 = vmatprep.subr.mxu0 %v360
        %774 = vmatpush1.msra.mxu0 %v359
        %775 = vmatprep.subr.mxu0 %v364
        %776 = vmatpush1.msra.mxu0 %v363
        %777 = vmatprep.subr.mxu0 %v368
        %778 = vmatpush1.msra.mxu0 %v367
        %779 = vmatprep.subr.mxu0 %v372
        %780 = vmatpush1.msra.mxu0 %v371
        %781 = vmatprep.subr.mxu0 %v376
        %782 = vmatpush1.msra.mxu0 %v375
        %783 = vmatprep.subr.mxu0 %v380
        %784 = vmatpush1.msra.mxu0 %v379
        %785 = vmatprep.subr.mxu0 %v384
        %786 = vmatpush1.msra.mxu0 %v383
        %787 = vmatprep.subr.mxu0 %v388
        %788 = vmatpush1.msra.mxu0 %v387
        %789 = vmatprep.subr.mxu0 %v392
        %790 = vmatpush1.msra.mxu0 %v391
        %791 = vmatprep.subr.mxu0 %v396
        %792 = vmatpush1.msra.mxu0 %v395
        %793 = vmatprep.subr.mxu0 %v400
        %794 = vmatpush1.msra.mxu0 %v399
        %795 = vmatprep.subr.mxu0 %v404
        %796 = vmatpush1.msra.mxu0 %v403
        %797 = vmatprep.subr.mxu0 %v408
        %798 = vmatpush1.msra.mxu0 %v407
        %799 = vmatprep.subr.mxu0 %v412
        %800 = vmatpush1.msra.mxu0 %v411
        %801 = vmatprep.subr.mxu0 %v416
        %802 = vmatpush1.msra.mxu0 %v415
        %803 = vmatprep.subr.mxu0 %v420
        %804 = vmatpush1.msra.mxu0 %v419
        %805 = vmatprep.subr.mxu0 %v424
        %806 = vmatpush1.msra.mxu0 %v423
        %807 = vmatprep.subr.mxu0 %v428
        %808 = vmatpush1.msra.mxu0 %v427
        %809 = vmatprep.subr.mxu0 %v432
        %810 = vmatpush1.msra.mxu0 %v431
        %811 = vmatprep.subr.mxu0 %v436
        %812 = vmatpush1.msra.mxu0 %v435
        %813 = vmatprep.subr.mxu0 %v440
        %814 = vmatpush1.msra.mxu0 %v439
        %815 = vmatprep.subr.mxu0 %v444
        %816 = vmatpush1.msra.mxu0 %v443
        %817 = vmatprep.subr.mxu0 %v448
        %818 = vmatpush1.msra.mxu0 %v447
        %819 = vmatprep.subr.mxu0 %v452
        %820 = vmatpush1.msra.mxu0 %v451
        %821 = vmatprep.subr.mxu0 %v456
        %822 = vmatpush1.msra.mxu0 %v455
        %823 = vmatprep.subr.mxu0 %v460
        %824 = vmatpush1.msra.mxu0 %v459
        %825 = vmatprep.subr.mxu0 %v464
        %826 = vmatpush1.msra.mxu0 %v463
        %827 = vmatprep.subr.mxu0 %v468
        %828 = vmatpush1.msra.mxu0 %v467
        %829 = vmatprep.subr.mxu0 %v472
        %830 = vmatpush1.msra.mxu0 %v471
        %831 = vmatprep.subr.mxu0 %v476
        %832 = vmatpush1.msra.mxu0 %v475
        %833 = vmatprep.mubr.f32.mxu0 %v346
        %834 = vmatmul.mubr.f32.gmra.mrb[0].mxu0 %v345
        %v835 = vpop.f32.mrb[0].mxu0
        %v836 = vadd.f32 %v618, %v835
        %v837 = vpop.f32.mrb[0].mxu0
        %v838 = vadd.f32 %v622, %v837
        %839 = vdwg.mxu0
        %840 = vmatprep.subr.mxu0 %v480
        %841 = vmatpush1.msra.mxu0 %v479
        %842 = vmatprep.subr.mxu0 %v484
        %843 = vmatpush1.msra.mxu0 %v483
        %844 = vmatprep.subr.mxu0 %v488
        %845 = vmatpush1.msra.mxu0 %v487
        %846 = vmatprep.subr.mxu0 %v492
        %847 = vmatpush1.msra.mxu0 %v491
        %848 = vmatprep.subr.mxu0 %v496
        %849 = vmatpush1.msra.mxu0 %v495
        %850 = vmatprep.subr.mxu0 %v500
        %851 = vmatpush1.msra.mxu0 %v499
        %852 = vmatprep.subr.mxu0 %v504
        %853 = vmatpush1.msra.mxu0 %v503
        %854 = vmatprep.subr.mxu0 %v508
        %855 = vmatpush1.msra.mxu0 %v507
        %856 = vmatprep.subr.mxu0 %v512
        %857 = vmatpush1.msra.mxu0 %v511
        %858 = vmatprep.subr.mxu0 %v516
        %859 = vmatpush1.msra.mxu0 %v515
        %860 = vmatprep.subr.mxu0 %v520
        %861 = vmatpush1.msra.mxu0 %v519
        %862 = vmatprep.subr.mxu0 %v524
        %863 = vmatpush1.msra.mxu0 %v523
        %864 = vmatprep.subr.mxu0 %v528
        %865 = vmatpush1.msra.mxu0 %v527
        %866 = vmatprep.subr.mxu0 %v532
        %867 = vmatpush1.msra.mxu0 %v531
        %868 = vmatprep.subr.mxu0 %v536
        %869 = vmatpush1.msra.mxu0 %v535
        %870 = vmatprep.subr.mxu0 %v540
        %871 = vmatpush1.msra.mxu0 %v539
        %872 = vmatprep.subr.mxu0 %v544
        %873 = vmatpush1.msra.mxu0 %v543
        %874 = vmatprep.subr.mxu0 %v548
        %875 = vmatpush1.msra.mxu0 %v547
        %876 = vmatprep.subr.mxu0 %v552
        %877 = vmatpush1.msra.mxu0 %v551
        %878 = vmatprep.subr.mxu0 %v556
        %879 = vmatpush1.msra.mxu0 %v555
        %880 = vmatprep.subr.mxu0 %v560
        %881 = vmatpush1.msra.mxu0 %v559
        %882 = vmatprep.subr.mxu0 %v564
        %883 = vmatpush1.msra.mxu0 %v563
        %884 = vmatprep.subr.mxu0 %v568
        %885 = vmatpush1.msra.mxu0 %v567
        %886 = vmatprep.subr.mxu0 %v572
        %887 = vmatpush1.msra.mxu0 %v571
        %888 = vmatprep.subr.mxu0 %v576
        %889 = vmatpush1.msra.mxu0 %v575
        %890 = vmatprep.subr.mxu0 %v580
        %891 = vmatpush1.msra.mxu0 %v579
        %892 = vmatprep.subr.mxu0 %v584
        %893 = vmatpush1.msra.mxu0 %v583
        %894 = vmatprep.subr.mxu0 %v588
        %895 = vmatpush1.msra.mxu0 %v587
        %896 = vmatprep.subr.mxu0 %v592
        %897 = vmatpush1.msra.mxu0 %v591
        %898 = vmatprep.subr.mxu0 %v596
        %899 = vmatpush1.msra.mxu0 %v595
        %900 = vmatprep.subr.mxu0 %v600
        %901 = vmatpush1.msra.mxu0 %v599
        %902 = vmatprep.subr.mxu0 %v604
        %903 = vmatpush1.msra.mxu0 %v603
        %904 = vmatprep.mubr.f32.mxu0 %v348
        %905 = vmatmul.mubr.f32.gmra.mrb[0].mxu0 %v347
        %v906 = vpop.f32.mrb[0].mxu0
        %v907 = vadd.f32 %v836, %v906
        %v908 = vpop.f32.mrb[0].mxu0
        %v909 = vadd.f32 %v838, %v908
        %910 = vdwg.mxu0
        %v911 = vadd.f32 %v258, %v765
        %v912 = vadd.f32 %v259, %v767
        %v913 = vadd.f32 %v260, %v907
        %v914 = vadd.f32 %v261, %v909
        %915 = vst [vmem:[%s257] sm:$0xff] %v911
        %916 = vst [vmem:[%s257 + $0x8] sm:$0xff] %v912
        %917 = vst [vmem:[%s257 + $0x10] sm:$0xff] %v913
        %918 = vst [vmem:[%s257 + $0x18] sm:$0xff] %v914
        %s919 = sand.u32 %s143, 1
        %s920 = scalar_lea.sflag [#allocation6], %s919
        %s921 = sand.u32 %s143, 1
        %s922 = smul.addr %s921, 32
        %s923 = scalar_lea.vmem [#allocation9], %s922
        // Predicated region
        $region49: #{tpu_custom_call.1} parent=39 // pred_check
          %p924 = pneg %p153
        $region50: #{tpu_custom_call.1} parent=39 // pred_check_branch
          %926 = sbr.rel (%p924) target = $region52
        $region51: #{tpu_custom_call.1} parent=39 // pred_region
          %s928 = ssub.s32 512, 512
          %929 = vsyncadd %s920, %s928
          %s930 = smul.addr %s25, 4
          %s931 = smul.addr %s930, 128
          %s932 = scalar_lea.hbm %s6, %s931
          %s934 = sshll.u32 %s923, 4
          %s935 = int_to_ptr.vmem [resolvable:$true] %s934
          %937 = dma.vmem_to_hbm [thread:$0]  %s935, 512, %s932, %s920
        $region52: #{tpu_custom_call.1} parent=39 // pred_fallthru
          _
      $region40: #{tpu_custom_call.1} parent=5 // pred_fallthru
        _
      %p938 = scmp.le.s32.totalorder 2, %s20
      // Predicated region
      $region53: #{tpu_custom_call.1} parent=5 // pred_check
        %p939 = pneg %p938
      $region54: #{tpu_custom_call.1} parent=5 // pred_check_branch
        %941 = sbr.rel (%p939) target = $region56
      $region55: #{tpu_custom_call.1} parent=5 // pred_region
        %s942 = ssub.s32 %s20, 2
        // Predicated region
        $region57: #{tpu_custom_call.1} parent=55 // pred_check
          %p943 = pneg %p159
        $region58: #{tpu_custom_call.1} parent=55 // pred_check_branch
          %945 = sbr.rel (%p943) target = $region60
        $region59: #{tpu_custom_call.1} parent=55 // pred_region
          %s946 = sand.u32 %s144, 1
          %s947 = scalar_lea.sflag [#allocation6], %s946
          %s948 = sand.u32 %s144, 1
          %s949 = smul.addr %s948, 32
          %s950 = scalar_lea.vmem [#allocation9], %s949
          %951 = dma.done %s947, 512
        $region60: #{tpu_custom_call.1} parent=55 // pred_fallthru
          _
      $region56: #{tpu_custom_call.1} parent=5 // pred_fallthru
        _
    $region6: #{tpu_custom_call.1} parent=1 // loop_footer
      %s24 = sadd.s32 1, %s20
    $region7: #{tpu_custom_call.1} parent=1 // loop_footer_branch
      %19 = sbr.rel target = $region3
    $region8: #{tpu_custom_call.1} parent=1 // loop_exit
      _
    %952 = vsyncpa [#allocation5], 1
    %s953 = scalar_lea.sflag [#allocation5], 1
    %954 = vsyncpa %s953, 1
    %955 = vsyncpa [#allocation8], 1
    %956 = vsyncpa [#allocation6], 1
    %s957 = scalar_lea.sflag [#allocation6], 1
    %958 = vsyncpa %s957, 1

</llo_original>
